<compile_context>
chip_gen: v5e
topology: v5e:2x2
jax: 0.10.0
libtpu: 0.0.40
codegen_flags: <defaults>
</compile_context>

<pallas_src>
import jax
import jax.numpy as jnp
from jax import lax
from jax.experimental import pallas as pl
from jax.experimental.pallas import tpu as pltpu


_NEG = -1e30  # large negative (python float) used instead of -inf for masking


def _round_up(x, m):
    return ((x + m - 1) // m) * m


def _vmem_estimate(TM, N_pad, D):
    f32 = 4
    txt_full = 2 * N_pad * D * f32      # resident normalized text (double-buffered)
    img_blk = 2 * TM * D * f32          # streamed image row block
    out_blk = 2 * TM * N_pad * f32      # sim output row block
    temps = 4 * TM * N_pad * f32        # live (TM, N_pad) f32 intermediates
    col_acc = 2 * 8 * N_pad * f32       # online column-LSE scratch
    return txt_full + img_blk + out_blk + temps + col_acc + (1 << 20)


def _choose_tiles(N, D, budget=56 * 1024 * 1024):
    """Pick (TM, N_pad): TM sublane-aligned, working set under the VMEM budget."""
    if N <= 512:
        TM = _round_up(max(N, 1), 8)
        return TM, TM
    for TM in (512, 256, 128, 64, 32, 16, 8):
        N_pad = _round_up(N, TM)
        if _vmem_estimate(TM, N_pad, D) <= budget:
            return TM, N_pad
    # TODO(synk): for very large N a full (TM, N_pad) sim row no longer fits
    # VMEM; move to a 2-D (row x column) flash-style tiling.
    return 8, _round_up(N, 8)


def _make_kernel(N, N_pad, TM, D):
    inv_2n = 0.5 / N               # python float -> not a captured jax constant
    masked = (N_pad != N)
    contract = (((1,), (1,)), ((), ()))  # contract last dim of both operands

    def kernel(scale_ref, img_ref, txt_ref, loss_ref, sim_ref,
               col_m_ref, col_s_ref, acc_ref):
        i = pl.program_id(0)

        @pl.when(i == 0)
        def _init():
            col_m_ref[...] = jnp.full((1, N_pad), _NEG, jnp.float32)
            col_s_ref[...] = jnp.zeros((1, N_pad), jnp.float32)
            acc_ref[0] = jnp.float32(0.0)

        scale = scale_ref[0]                              # exp(t), SMEM scalar
        img_blk = img_ref[...]                            # (TM, D), normalized
        row0 = pl.multiple_of(i * TM, TM)
        txt_blk = txt_ref[pl.ds(row0, TM), :]             # (TM, D), normalized

        # ---- single MXU matmul: similarity rows (contraction on last dims) ----
        sim_blk = lax.dot_general(img_blk, txt_ref[...], contract,
                                  preferred_element_type=jnp.float32)  # (TM, N_pad)
        sim_ref[...] = sim_blk                            # unscaled similarity out

        logits = sim_blk * scale

        if masked:
            row_ids = row0 + lax.broadcasted_iota(jnp.int32, (TM, 1), 0)
            row_ok = row_ids < N
            col_ids = lax.broadcasted_iota(jnp.int32, (TM, N_pad), 1)
            logits_a = jnp.where(col_ids < N, logits, _NEG)   # mask padded cols
            logits_b = jnp.where(row_ok, logits, _NEG)        # mask padded rows
        else:
            logits_a = logits
            logits_b = logits

        # ---- image -> text: per-row logsumexp (lane-axis reduce) ----
        m_a = jnp.max(logits_a, axis=1, keepdims=True)
        lse_a = m_a + jnp.log(jnp.sum(jnp.exp(logits_a - m_a),
                                      axis=1, keepdims=True))

        # ---- text -> image: online per-column logsumexp (no 2nd matmul) ----
        m_blk = jnp.max(logits_b, axis=0, keepdims=True)       # (1, N_pad)
        m_new = jnp.maximum(col_m_ref[...], m_blk)
        col_s_ref[...] = (col_s_ref[...] * jnp.exp(col_m_ref[...] - m_new)
                          + jnp.sum(jnp.exp(logits_b - m_new),
                                    axis=0, keepdims=True))
        col_m_ref[...] = m_new

        # ---- diagonal logits via a row-wise dot (no NxN mask machinery) ----
        diag = jnp.sum(img_blk * txt_blk, axis=1, keepdims=True) * scale  # (TM,1)

        per_row = lse_a - 2.0 * diag
        if masked:
            per_row = jnp.where(row_ok, per_row, 0.0)
        acc_ref[0] = acc_ref[0] + jnp.sum(per_row)

        @pl.when(i == pl.num_programs(0) - 1)
        def _final():
            lse_b = col_m_ref[...] + jnp.log(col_s_ref[...])    # (1, N_pad)
            if masked:
                cid = lax.broadcasted_iota(jnp.int32, (1, N_pad), 1)
                lse_b = jnp.where(cid < N, lse_b, 0.0)
            loss_ref[0] = (acc_ref[0] + jnp.sum(lse_b)) * inv_2n

    return kernel


def contrastive_loss(image_embedding, text_embedding, t):
    """Returns (loss: f32 scalar, similarity: f32[N, N])."""
    N, D = image_embedding.shape
    assert text_embedding.shape == (N, D)

    # L2-normalize (F.normalize p=2, dim=1, eps=1e-12) with rsqrt and hoist
    # exp(t) once in the wrapper; the kernel operands are already normalized,
    # so no raw-input residency / normalization scratch is needed.
    img = image_embedding.astype(jnp.float32)
    txt = text_embedding.astype(jnp.float32)
    img_n = img * lax.rsqrt(jnp.maximum(
        jnp.sum(img * img, axis=1, keepdims=True), 1e-24))
    txt_n = txt * lax.rsqrt(jnp.maximum(
        jnp.sum(txt * txt, axis=1, keepdims=True), 1e-24))
    scale = jnp.exp(jnp.asarray(t, jnp.float32).reshape((1,)))

    TM, N_pad = _choose_tiles(N, D)
    if N_pad != N:
        pad = N_pad - N
        img_n = jnp.pad(img_n, ((0, pad), (0, 0)))
        txt_n = jnp.pad(txt_n, ((0, pad), (0, 0)))
    num_blocks = N_pad // TM

    est = _vmem_estimate(TM, N_pad, D)
    vmem_limit = int(max(est, 32 * 1024 * 1024))

    kernel = _make_kernel(N, N_pad, TM, D)

    loss, sim = pl.pallas_call(
        kernel,
        grid=(num_blocks,),
        out_shape=(
            jax.ShapeDtypeStruct((1,), jnp.float32),          # loss
            jax.ShapeDtypeStruct((N_pad, N_pad), jnp.float32),  # similarity
        ),
        in_specs=[
            pl.BlockSpec(memory_space=pltpu.MemorySpace.SMEM),   # exp(t)
            pl.BlockSpec((TM, D), lambda i: (i, 0)),             # img_n row block
            pl.BlockSpec((N_pad, D), lambda i: (0, 0)),          # txt_n (resident)
        ],
        out_specs=(
            pl.BlockSpec(memory_space=pltpu.MemorySpace.SMEM),   # loss scalar
            pl.BlockSpec((TM, N_pad), lambda i: (i, 0)),         # sim row block
        ),
        scratch_shapes=[
            pltpu.VMEM((1, N_pad), jnp.float32),   # online column-LSE running max
            pltpu.VMEM((1, N_pad), jnp.float32),   # online column-LSE running sum
            pltpu.SMEM((1,), jnp.float32),         # loss accumulator
        ],
        compiler_params=pltpu.CompilerParams(
            dimension_semantics=("arbitrary",),
            vmem_limit_bytes=vmem_limit,
        ),
    )(scale, img_n, txt_n)

    if N_pad != N:
        sim = sim[:N, :N]
    return loss[0], sim


def _reference(image_embedding, text_embedding, t):
    """Pure-JAX reference mirroring the PyTorch module."""
    img = image_embedding.astype(jnp.float32)
    txt = text_embedding.astype(jnp.float32)
    img_n = img / jnp.maximum(jnp.linalg.norm(img, axis=1, keepdims=True), 1e-12)
    txt_n = txt / jnp.maximum(jnp.linalg.norm(txt, axis=1, keepdims=True), 1e-12)
    sim = img_n @ txt_n.T
    logits = sim * jnp.exp(t)
    labels = jnp.arange(logits.shape[0])

    def ce(lg):
        lse = jax.nn.logsumexp(lg, axis=1)
        return jnp.mean(lse - lg[jnp.arange(lg.shape[0]), labels])

    return (ce(logits) + ce(logits.T)) / 2.0, sim


if __name__ == "__main__":
    key = jax.random.PRNGKey(0)
    k_img, k_txt, k_t = jax.random.split(key, 3)

    N, D = 8, 32                       # small batch of paired (image, text) embeddings
    image_embedding = jax.random.normal(k_img, (N, D), dtype=jnp.float32)
    text_embedding = jax.random.normal(k_txt, (N, D), dtype=jnp.float32)
    t_param = jax.random.normal(k_t, (1,), dtype=jnp.float32)   # nn.Parameter(torch.randn(1))

    loss, sim = contrastive_loss(image_embedding, text_embedding, t_param)
    loss = jax.block_until_ready(loss)
    sim = jax.block_until_ready(sim)

    ref_loss, ref_sim = _reference(image_embedding, text_embedding, t_param[0])
    assert jnp.allclose(loss, ref_loss, atol=1e-4, rtol=1e-4), (loss, ref_loss)
    assert jnp.allclose(sim, ref_sim, atol=1e-4, rtol=1e-4)

    print("KERNEL_OK")
</pallas_src>

<mosaic_0001>
module attributes {stable_mosaic.version = 11 : i64} {
  func.func @kernel(%arg0: i32, %arg1: memref<1xf32, #tpu.memory_space<smem>>, %arg2: memref<8x32xf32, #tpu.memory_space<vmem>>, %arg3: memref<8x32xf32, #tpu.memory_space<vmem>>, %arg4: memref<1xf32, #tpu.memory_space<smem>>, %arg5: memref<8x8xf32, #tpu.memory_space<vmem>>, %arg6: memref<1x8xf32, #tpu.memory_space<vmem>>, %arg7: memref<1x8xf32, #tpu.memory_space<vmem>>, %arg8: memref<1xf32, #tpu.memory_space<smem>>) attributes {dimension_semantics = [#tpu.dimension_semantics<arbitrary>], iteration_bounds = array<i64: 1>, scalar_prefetch = 0 : i64, scratch_operands = 3 : i64, tpu.core_type = #tpu.core_type<tc>, window_params = [{transform_indices = @transform_0, window_bounds = array<i64: 1>}, {transform_indices = @transform_1, window_bounds = array<i64: 8, 32>}, {pipeline_mode = #tpu.pipeline_mode<synchronous>, transform_indices = @transform_2, window_bounds = array<i64: 8, 32>}, {transform_indices = @transform_3, window_bounds = array<i64: 1>}, {transform_indices = @transform_4, window_bounds = array<i64: 8, 8>}]} {
    %c0_i32 = arith.constant 0 : i32
    %0 = arith.cmpi eq, %arg0, %c0_i32 : i32
    %1 = arith.extui %0 : i1 to i32
    %c0_i32_0 = arith.constant 0 : i32
    %2 = arith.cmpi ne, %1, %c0_i32_0 : i32
    scf.if %2 {
      %cst_29 = arith.constant -1.000000e+30 : f32
      %58 = vector.broadcast %cst_29 : f32 to vector<1x8xf32>
      %c0_30 = arith.constant 0 : index
      %c0_31 = arith.constant 0 : index
      %59 = vector.load %arg6[%c0_30, %c0_31] : memref<1x8xf32, #tpu.memory_space<vmem>>, vector<1x8xf32>
      tpu.vector_store %arg6[%c0_30, %c0_31], %58 {strides = array<i32>} : memref<1x8xf32, #tpu.memory_space<vmem>>, vector<1x8xf32>,
      %cst_32 = arith.constant 0.000000e+00 : f32
      %60 = vector.broadcast %cst_32 : f32 to vector<1x8xf32>
      %c0_33 = arith.constant 0 : index
      %c0_34 = arith.constant 0 : index
      %61 = vector.load %arg7[%c0_33, %c0_34] : memref<1x8xf32, #tpu.memory_space<vmem>>, vector<1x8xf32>
      tpu.vector_store %arg7[%c0_33, %c0_34], %60 {strides = array<i32>} : memref<1x8xf32, #tpu.memory_space<vmem>>, vector<1x8xf32>,
      %cst_35 = arith.constant 0.000000e+00 : f32
      %c0_36 = arith.constant 0 : index
      %62 = memref.load %arg8[%c0_36] : memref<1xf32, #tpu.memory_space<smem>>
      memref.store %cst_35, %arg8[%c0_36] : memref<1xf32, #tpu.memory_space<smem>>
    } else {
    }
    %c0 = arith.constant 0 : index
    %3 = memref.load %arg1[%c0] : memref<1xf32, #tpu.memory_space<smem>>
    %c0_1 = arith.constant 0 : index
    %c0_2 = arith.constant 0 : index
    %4 = vector.load %arg2[%c0_1, %c0_2] : memref<8x32xf32, #tpu.memory_space<vmem>>, vector<8x32xf32>
    %c8_i32 = arith.constant 8 : i32
    %5 = arith.muli %arg0, %c8_i32 : i32
    %6 = tpu.assume_multiple %5, 8 : i32
    %7 = arith.index_cast %6 : i32 to index
    %c0_3 = arith.constant 0 : index
    %8 = vector.load %arg3[%7, %c0_3] : memref<8x32xf32, #tpu.memory_space<vmem>>, vector<8x32xf32>
    %c0_4 = arith.constant 0 : index
    %c0_5 = arith.constant 0 : index
    %9 = vector.load %arg3[%c0_4, %c0_5] : memref<8x32xf32, #tpu.memory_space<vmem>>, vector<8x32xf32>
    %cst = arith.constant dense<0.000000e+00> : vector<8x8xf32>
    %10 = tpu.matmul %4, %9, %cst {dimension_numbers = #tpu.dot_dimension_numbers<[1], [1], [0], [0], [0, 0, 1, 0], [], []>} : vector<8x32xf32>, vector<8x32xf32>, vector<8x8xf32> -> vector<8x8xf32>
    %c0_6 = arith.constant 0 : index
    %c0_7 = arith.constant 0 : index
    %11 = vector.load %arg5[%c0_6, %c0_7] : memref<8x8xf32, #tpu.memory_space<vmem>>, vector<8x8xf32>
    tpu.vector_store %arg5[%c0_6, %c0_7], %10 {strides = array<i32>} : memref<8x8xf32, #tpu.memory_space<vmem>>, vector<8x8xf32>,
    %12 = vector.broadcast %3 : f32 to vector<8x8xf32>
    %13 = arith.mulf %10, %12 : vector<8x8xf32>
    %cst_8 = arith.constant dense<0xFF800000> : vector<8xf32>
    %14 = vector.multi_reduction <maximumf>, %13, %cst_8 [1] : vector<8x8xf32> to vector<8xf32>
    %15 = vector.shape_cast %14 : vector<8xf32> to vector<8x1xf32>
    %16 = vector.broadcast %15 : vector<8x1xf32> to vector<8x8xf32>
    %17 = arith.subf %13, %16 : vector<8x8xf32>
    %18 = math.exp %17 : vector<8x8xf32>
    %cst_9 = arith.constant dense<0.000000e+00> : vector<8xf32>
    %19 = vector.multi_reduction <add>, %18, %cst_9 [1] : vector<8x8xf32> to vector<8xf32>
    %20 = vector.shape_cast %19 : vector<8xf32> to vector<8x1xf32>
    %21 = math.log %20 : vector<8x1xf32>
    %22 = arith.addf %15, %21 : vector<8x1xf32>
    %cst_10 = arith.constant dense<0xFF800000> : vector<8xf32>
    %23 = vector.multi_reduction <maximumf>, %13, %cst_10 [0] : vector<8x8xf32> to vector<8xf32>
    %24 = vector.shape_cast %23 : vector<8xf32> to vector<1x8xf32>
    %c0_11 = arith.constant 0 : index
    %c0_12 = arith.constant 0 : index
    %25 = vector.load %arg6[%c0_11, %c0_12] : memref<1x8xf32, #tpu.memory_space<vmem>>, vector<1x8xf32>
    %26 = arith.maximumf %25, %24 : vector<1x8xf32>
    %c0_13 = arith.constant 0 : index
    %c0_14 = arith.constant 0 : index
    %27 = vector.load %arg7[%c0_13, %c0_14] : memref<1x8xf32, #tpu.memory_space<vmem>>, vector<1x8xf32>
    %c0_15 = arith.constant 0 : index
    %c0_16 = arith.constant 0 : index
    %28 = vector.load %arg6[%c0_15, %c0_16] : memref<1x8xf32, #tpu.memory_space<vmem>>, vector<1x8xf32>
    %29 = arith.subf %28, %26 : vector<1x8xf32>
    %30 = math.exp %29 : vector<1x8xf32>
    %31 = arith.mulf %27, %30 : vector<1x8xf32>
    %32 = vector.broadcast %26 : vector<1x8xf32> to vector<8x8xf32>
    %33 = arith.subf %13, %32 : vector<8x8xf32>
    %34 = math.exp %33 : vector<8x8xf32>
    %cst_17 = arith.constant dense<0.000000e+00> : vector<8xf32>
    %35 = vector.multi_reduction <add>, %34, %cst_17 [0] : vector<8x8xf32> to vector<8xf32>
    %36 = vector.shape_cast %35 : vector<8xf32> to vector<1x8xf32>
    %37 = arith.addf %31, %36 : vector<1x8xf32>
    %c0_18 = arith.constant 0 : index
    %c0_19 = arith.constant 0 : index
    %38 = vector.load %arg7[%c0_18, %c0_19] : memref<1x8xf32, #tpu.memory_space<vmem>>, vector<1x8xf32>
    tpu.vector_store %arg7[%c0_18, %c0_19], %37 {strides = array<i32>} : memref<1x8xf32, #tpu.memory_space<vmem>>, vector<1x8xf32>,
    %c0_20 = arith.constant 0 : index
    %c0_21 = arith.constant 0 : index
    %39 = vector.load %arg6[%c0_20, %c0_21] : memref<1x8xf32, #tpu.memory_space<vmem>>, vector<1x8xf32>
    tpu.vector_store %arg6[%c0_20, %c0_21], %26 {strides = array<i32>} : memref<1x8xf32, #tpu.memory_space<vmem>>, vector<1x8xf32>,
    %40 = arith.mulf %4, %8 : vector<8x32xf32>
    %cst_22 = arith.constant dense<0.000000e+00> : vector<8xf32>
    %41 = vector.multi_reduction <add>, %40, %cst_22 [1] : vector<8x32xf32> to vector<8xf32>
    %42 = vector.shape_cast %41 : vector<8xf32> to vector<8x1xf32>
    %43 = vector.broadcast %3 : f32 to vector<8x1xf32>
    %44 = arith.mulf %42, %43 : vector<8x1xf32>
    %cst_23 = arith.constant 2.000000e+00 : f32
    %45 = vector.broadcast %cst_23 : f32 to vector<8x1xf32>
    %46 = arith.mulf %45, %44 : vector<8x1xf32>
    %47 = arith.subf %22, %46 : vector<8x1xf32>
    %c0_24 = arith.constant 0 : index
    %48 = memref.load %arg8[%c0_24] : memref<1xf32, #tpu.memory_space<smem>>
    %49 = vector.shape_cast %47 : vector<8x1xf32> to vector<1x8x1xf32>
    %cst_25 = arith.constant dense<0.000000e+00> : vector<1xf32>
    %50 = vector.multi_reduction <add>, %49, %cst_25 [1, 2] : vector<1x8x1xf32> to vector<1xf32>
    %51 = vector.shape_cast %50 : vector<1xf32> to vector<1x1x1xf32>
    %52 = vector.extract %51[0, 0, 0] : f32 from vector<1x1x1xf32>
    %53 = arith.addf %48, %52 : f32
    %c0_26 = arith.constant 0 : index
    %54 = memref.load %arg8[%c0_26] : memref<1xf32, #tpu.memory_space<smem>>
    memref.store %53, %arg8[%c0_26] : memref<1xf32, #tpu.memory_space<smem>>
    %c0_i32_27 = arith.constant 0 : i32
    %55 = arith.cmpi eq, %arg0, %c0_i32_27 : i32
    %56 = arith.extui %55 : i1 to i32
    %c0_i32_28 = arith.constant 0 : i32
    %57 = arith.cmpi ne, %56, %c0_i32_28 : i32
    scf.if %57 {
      %c0_29 = arith.constant 0 : index
      %c0_30 = arith.constant 0 : index
      %58 = vector.load %arg6[%c0_29, %c0_30] : memref<1x8xf32, #tpu.memory_space<vmem>>, vector<1x8xf32>
      %c0_31 = arith.constant 0 : index
      %c0_32 = arith.constant 0 : index
      %59 = vector.load %arg7[%c0_31, %c0_32] : memref<1x8xf32, #tpu.memory_space<vmem>>, vector<1x8xf32>
      %60 = math.log %59 : vector<1x8xf32>
      %61 = arith.addf %58, %60 : vector<1x8xf32>
      %c0_33 = arith.constant 0 : index
      %62 = memref.load %arg8[%c0_33] : memref<1xf32, #tpu.memory_space<smem>>
      %63 = vector.shape_cast %61 : vector<1x8xf32> to vector<1x1x8xf32>
      %cst_34 = arith.constant dense<0.000000e+00> : vector<1xf32>
      %64 = vector.multi_reduction <add>, %63, %cst_34 [1, 2] : vector<1x1x8xf32> to vector<1xf32>
      %65 = vector.shape_cast %64 : vector<1xf32> to vector<1x1x1xf32>
      %66 = vector.extract %65[0, 0, 0] : f32 from vector<1x1x1xf32>
      %67 = arith.addf %62, %66 : f32
      %cst_35 = arith.constant 6.250000e-02 : f32
      %68 = arith.mulf %67, %cst_35 : f32
      %c0_36 = arith.constant 0 : index
      %69 = memref.load %arg4[%c0_36] : memref<1xf32, #tpu.memory_space<smem>>
      memref.store %68, %arg4[%c0_36] : memref<1xf32, #tpu.memory_space<smem>>
    } else {
    }
    return
  }
  func.func @transform_0(%arg0: i32) -> i32 {
    %c0_i32 = arith.constant 0 : i32
    %c0_i32_0 = arith.constant 0 : i32
    return %c0_i32 : i32
  }
  func.func @transform_1(%arg0: i32) -> (i32, i32) {
    %c0_i32 = arith.constant 0 : i32
    %c0_i32_0 = arith.constant 0 : i32
    return %arg0, %c0_i32 : i32, i32
  }
  func.func @transform_2(%arg0: i32) -> (i32, i32) {
    %c0_i32 = arith.constant 0 : i32
    %c0_i32_0 = arith.constant 0 : i32
    %c0_i32_1 = arith.constant 0 : i32
    return %c0_i32, %c0_i32_0 : i32, i32
  }
  func.func @transform_3(%arg0: i32) -> i32 {
    %c0_i32 = arith.constant 0 : i32
    %c0_i32_0 = arith.constant 0 : i32
    return %c0_i32 : i32
  }
  func.func @transform_4(%arg0: i32) -> (i32, i32) {
    %c0_i32 = arith.constant 0 : i32
    %c0_i32_0 = arith.constant 0 : i32
    return %arg0, %c0_i32 : i32, i32
  }
}

</mosaic_0001>

<llo_original>
// kernel: tpu_custom_call.1
$region0: #{tpu_custom_call.1}
  #allocation0 [shape = 'u32[]', space=smem, size = 0x4, offset = 0x4, fixed_abs, tag = 'smem constant byte address 0x4 - core index']
  #allocation1 [shape = 'u32[72,128]{1,0:T(1,128)}', space=vmem, size = 0x9000, scoped, tag = 'internal scratch']
  #allocation2 [shape = 'f32[1,8]{1,0:T(1,128)}', space=vmem, size = 0x200, scoped, tag = 'scratch operand']
  #allocation3 [shape = 'f32[1,8]{1,0:T(1,128)}', space=vmem, size = 0x200, scoped, tag = 'scratch operand']
  #allocation4 [shape = 'f32[1]{0:T(128)}', space=smem, size = 0x200, scoped, tag = 'scratch operand']
  #allocation5 [shape = 'f32[1]{0:T(128)S(6)}', space=smem, size = 0x200, scoped, tag = 'scoped memory for tpu_custom_call.1']
  %s0 = inlined_call_operand.<no memory space> [shape: f32[1], index: 0, kind: input, shape index: {}]
  %s1 = inlined_call_operand.hbm [shape: f32[8,32], index: 1, kind: input, shape index: {}]
  %s2 = inlined_call_operand.hbm [shape: f32[8,32], index: 2, kind: input, shape index: {}]
  %s3 = inlined_call_operand.hbm [shape: f32[1], index: 3, kind: output, shape index: {0}]
  %s4 = inlined_call_operand.hbm [shape: f32[8,8], index: 4, kind: output, shape index: {1}]
  %5 = xla_tuple %s3, %s4
  %s6 = sld [smem:[#allocation0]]
  $region46: #{tpu_custom_call.1} parent=0
    _
  %s8 = ssub.s32 1, %s6
  %s9 = scalar_select 0, %s8, %s6
  %10 = sst [smem:[#allocation5]] %s0
  $region1: #{tpu_custom_call.1} parent=0
    #allocation6 [shape = 'u8[4096]{0}', space=vmem, size = 0x1000, scoped, tag = 'input window, operand 1, single buffered']
    #allocation7 [shape = 's32[1]{0}', space=sflag, size = 0x4, scoped, tag = 'scoped memory for tpu_custom_call.1']
    #allocation8 [shape = 's32[1]{0}', space=sflag, size = 0x4, scoped, tag = 'scoped memory for tpu_custom_call.1']
    #allocation9 [shape = 's32[1]{0}', space=sflag, size = 0x4, scoped, tag = 'scoped memory for tpu_custom_call.1']
    #allocation10 [shape = 'u8[4096]{0}', space=vmem, size = 0x1000, scoped, tag = 'input window, operand 2, single buffered']
    #allocation11 [shape = 's32[1]{0}', space=sflag, size = 0x4, scoped, tag = 'scoped memory for tpu_custom_call.1']
    #allocation12 [shape = 'u8[512]{0}', space=smem, size = 0x200, scoped, tag = 'output window, operand 0, single buffered']
    #allocation13 [shape = 'u8[4096]{0}', space=vmem, size = 0x1000, scoped, tag = 'output window, operand 1, single buffered']
    %11 = vsyncpa [#allocation7], 0
    %12 = vsyncpa [#allocation11], 0
    %13 = vsyncpa [#allocation9], 0
    %14 = vsyncpa [#allocation8], 0
    // Predicated region
    $region2: #{tpu_custom_call.1} parent=1 // pred_check
      _
    $region3: #{tpu_custom_call.1} parent=1 // pred_check_branch
      %16 = sbr.rel (0) target = $region5
    $region4: #{tpu_custom_call.1} parent=1 // pred_region
      _
    $region5: #{tpu_custom_call.1} parent=1 // pred_fallthru
      _
    // Predicated region
    $region6: #{tpu_custom_call.1} parent=1 // pred_check
      _
    $region7: #{tpu_custom_call.1} parent=1 // pred_check_branch
      %18 = sbr.rel (0) target = $region9
    $region8: #{tpu_custom_call.1} parent=1 // pred_region
      %20 = vsyncadd [#allocation7], 0
      %s22 = sshll.u32 %s1, 4
      %s23 = int_to_ptr.hbm [resolvable:$true] %s22
      %s24 = sshll.u32 [#allocation6], 4
      %s25 = int_to_ptr.vmem [resolvable:$true] %s24
      %27 = dma.hbm_to_vmem [thread:$0]  %s23, 128, %s25, [#allocation7]
    $region9: #{tpu_custom_call.1} parent=1 // pred_fallthru
      _
    // Predicated region
    $region10: #{tpu_custom_call.1} parent=1 // pred_check
      _
    $region11: #{tpu_custom_call.1} parent=1 // pred_check_branch
      %29 = sbr.rel (0) target = $region13
    $region12: #{tpu_custom_call.1} parent=1 // pred_region
      %31 = vsyncadd [#allocation11], 0
      %s33 = sshll.u32 %s2, 4
      %s34 = int_to_ptr.hbm [resolvable:$true] %s33
      %s35 = sshll.u32 [#allocation10], 4
      %s36 = int_to_ptr.vmem [resolvable:$true] %s35
      %38 = dma.hbm_to_vmem [thread:$0]  %s34, 128, %s36, [#allocation11]
    $region13: #{tpu_custom_call.1} parent=1 // pred_fallthru
      _
    // Predicated region
    $region14: #{tpu_custom_call.1} parent=1 // pred_check
      _
    $region15: #{tpu_custom_call.1} parent=1 // pred_check_branch
      %40 = sbr.rel (0) target = $region17
    $region16: #{tpu_custom_call.1} parent=1 // pred_region
      %42 = dma.done [#allocation7], 128
    $region17: #{tpu_custom_call.1} parent=1 // pred_fallthru
      _
    // Predicated region
    $region18: #{tpu_custom_call.1} parent=1 // pred_check
      _
    $region19: #{tpu_custom_call.1} parent=1 // pred_check_branch
      %44 = sbr.rel (0) target = $region21
    $region20: #{tpu_custom_call.1} parent=1 // pred_region
      %46 = dma.done [#allocation11], 128
    $region21: #{tpu_custom_call.1} parent=1 // pred_fallthru
      _
    %p47 = scmp.eq.s32.totalorder 0, 0
    // Predicated region
    $region22: #{tpu_custom_call.1} parent=1 // pred_check
      %p48 = pneg %p47
    $region23: #{tpu_custom_call.1} parent=1 // pred_check_branch
      %50 = sbr.rel (%p48) target = $region25
    $region24: #{tpu_custom_call.1} parent=1 // pred_region
      %vm51 = vcmask 57344
      %52 = vst.msk [vmem:[#allocation2] sm:$0x1] %vm51, -1e+30
      %53 = vst.msk [vmem:[#allocation3] sm:$0x1] %vm51, 0.0
      %s54 = scalar_lea.smem [#allocation4], 0
      %55 = sst [smem:[%s54]] 0.0
    $region25: #{tpu_custom_call.1} parent=1 // pred_fallthru
      _
    %s56 = sld [smem:[#allocation5]]
    %v57 = vld [vmem:[#allocation6] sm:$0xff]
    %s58 = smul.u32 0, 8
    %s59 = scalar_lea.vmem [#allocation10], %s58
    %v60 = vld [vmem:[%s59] sm:$0xff]
    %v61 = vld [vmem:[#allocation10] sm:$0xff]
    %vm62 = vcmask 261120
    %v64 = vsel %vm62, %v57, 0
    %v67 = vsel %vm62, %v61, 0
    %69 = vmatpush.xpose.msra.mxu0 0.0
    %70 = vmatpush.xpose.msra.mxu0 0.0
    %71 = vmatpush.xpose.msra.mxu0 0.0
    %72 = vmatpush.xpose.msra.mxu0 0.0
    %73 = vmatpush.xpose.msra.mxu0 0.0
    %74 = vmatpush.xpose.msra.mxu0 0.0
    %75 = vmatpush.xpose.msra.mxu0 0.0
    %76 = vmatpush.xpose.msra.mxu0 0.0
    %77 = vmatpush.xpose.msra.mxu0 0.0
    %78 = vmatpush.xpose.msra.mxu0 0.0
    %79 = vmatpush.xpose.msra.mxu0 0.0
    %80 = vmatpush.xpose.msra.mxu0 0.0
    %81 = vmatpush.xpose.msra.mxu0 0.0
    %82 = vmatpush.xpose.msra.mxu0 0.0
    %83 = vmatpush.xpose.msra.mxu0 0.0
    %84 = vmatpush.xpose.msra.mxu0 %v67
    %85 = vmatmul.f32.gmra.mxu0 %v64
    %v86 = vpop.f32.mrf.mxu0
    %v87 = vadd.f32 0.0, %v86
    %88 = vdwg.mxu0
    %vm89 = vcmask 64512
    %90 = vst.msk [vmem:[#allocation13] sm:$0xff] %vm89, %v87
    %v91 = vstv %s56
    %v92 = vmul.f32 %v87, %v91
    %v93 = vsel %vm89, %v92, -inf
    %94 = vmax.xlane.f32.xlu0 %v93
    %v95 = vpop.xlane.xlu0 %94
    %v96 = vsub.f32 %v92, %v95
    %v97 = vmul.f32 %v96, 1.442695
    %v98 = vpow.pop %v97
    %v99 = vsel %vm89, %v98, 0.0
    %100 = vadd.xlane.f32.xlu0 %v99
    %v101 = vpop.xlane.xlu0 %100
    %v102 = vlog2.pop %v101
    %v103 = vmul.f32 %v102, 0.6931472
    %v104 = vadd.f32 %v95, %v103
    %v105 = vrot.slane %v93, 4
    %v106 = vmax.f32 %v93, %v105
    %v107 = vrot.slane %v106, 2
    %v108 = vmax.f32 %v106, %v107
    %v109 = vrot.slane %v108, 1
    %v110 = vmax.f32 %v108, %v109
    %v111 = vld [vmem:[#allocation2] sm:$0x1]
    %v112 = vmax.f32 %v111, %v110
    %v113 = vld [vmem:[#allocation3] sm:$0x1]
    %v114 = vsub.f32 %v111, %v112
    %v115 = vmul.f32 %v114, 1.442695
    %v116 = vpow.pop %v115
    %v117 = vmul.f32 %v113, %v116
    %v119 = vperm.slane %v112, 0
    %v121 = vsub.f32 %v92, %v119
    %v122 = vmul.f32 %v121, 1.442695
    %v123 = vpow.pop %v122
    %v124 = vsel %vm89, %v123, 0.0
    %v125 = vrot.slane %v124, 4
    %v126 = vadd.f32 %v124, %v125
    %v127 = vrot.slane %v126, 2
    %v128 = vadd.f32 %v126, %v127
    %v129 = vrot.slane %v128, 1
    %v130 = vadd.f32 %v128, %v129
    %v131 = vadd.f32 %v117, %v130
    %vm132 = vcmask 57344
    %133 = vst.msk [vmem:[#allocation3] sm:$0x1] %vm132, %v131
    %134 = vst.msk [vmem:[#allocation2] sm:$0x1] %vm132, %v112
    %v135 = vmul.f32 %v57, %v60
    %v136 = vsel %vm62, %v135, 0.0
    %137 = vadd.xlane.f32.xlu0 %v136
    %v138 = vpop.xlane.xlu0 %137
    %v139 = vmul.f32 %v138, %v91
    %v140 = vmul.f32 %v139, 2.0
    %v141 = vsub.f32 %v104, %v140
    %s142 = sld [smem:[#allocation4]]
    %vm143 = vcmask 7168
    %v144 = vsel %vm143, %v141, 0.0
    %145 = vadd.xlane.f32.xlu0 %v144
    %v146 = vpop.xlane.xlu0 %145
    %v147 = vrot.slane %v146, 4
    %v148 = vadd.f32 %v146, %v147
    %v149 = vrot.slane %v148, 2
    %v150 = vadd.f32 %v148, %v149
    %v151 = vrot.slane %v150, 1
    %v152 = vadd.f32 %v150, %v151
    %s153 = vtos %v152
    %s154 = sadd.f32 %s142, %s153
    %s155 = scalar_lea.smem [#allocation4], 0
    %156 = sst [smem:[%s155]] %s154
    // Predicated region
    $region26: #{tpu_custom_call.1} parent=1 // pred_check
      %p157 = pneg %p47
    $region27: #{tpu_custom_call.1} parent=1 // pred_check_branch
      %159 = sbr.rel (%p157) target = $region29
    $region28: #{tpu_custom_call.1} parent=1 // pred_region
      %v160 = vld [vmem:[#allocation2] sm:$0x1]
      %v161 = vld [vmem:[#allocation3] sm:$0x1]
      %v162 = vlog2.pop %v161
      %v163 = vmul.f32 %v162, 0.6931472
      %v164 = vadd.f32 %v160, %v163
      %s165 = sld [smem:[#allocation4]]
      %v166 = vsel %vm132, %v164, 0.0
      %167 = vadd.xlane.f32.xlu0 %v166
      %v168 = vpop.xlane.xlu0 %167
      %v169 = vrot.slane %v168, 4
      %v170 = vadd.f32 %v168, %v169
      %v171 = vrot.slane %v170, 2
      %v172 = vadd.f32 %v170, %v171
      %v173 = vrot.slane %v172, 1
      %v174 = vadd.f32 %v172, %v173
      %s175 = vtos %v174
      %s176 = sadd.f32 %s165, %s175
      %s177 = smul.f32 %s176, 0.0625
      %s178 = scalar_lea.smem [#allocation12], 0
      %179 = sst [smem:[%s178]] %s177
    $region29: #{tpu_custom_call.1} parent=1 // pred_fallthru
      _
    // Predicated region
    $region30: #{tpu_custom_call.1} parent=1 // pred_check
      _
    $region31: #{tpu_custom_call.1} parent=1 // pred_check_branch
      %181 = sbr.rel (0) target = $region33
    $region32: #{tpu_custom_call.1} parent=1 // pred_region
      %183 = vsyncadd [#allocation9], 0
      %s185 = sshll.u32 %s3, 4
      %s186 = int_to_ptr.hbm [resolvable:$true] %s185
      %188 = dma.smem_to_hbm [#allocation12], 16, %s186, [#allocation9]
    $region33: #{tpu_custom_call.1} parent=1 // pred_fallthru
      _
    // Predicated region
    $region34: #{tpu_custom_call.1} parent=1 // pred_check
      _
    $region35: #{tpu_custom_call.1} parent=1 // pred_check_branch
      %190 = sbr.rel (0) target = $region37
    $region36: #{tpu_custom_call.1} parent=1 // pred_region
      %192 = vsyncadd [#allocation8], 0
      %s194 = sshll.u32 [#allocation13], 4
      %s195 = int_to_ptr.vmem [resolvable:$true] %s194
      %s196 = sshll.u32 %s4, 4
      %s197 = int_to_ptr.hbm [resolvable:$true] %s196
      %199 = dma.vmem_to_hbm [thread:$0]  %s195, 128, %s197, [#allocation8]
    $region37: #{tpu_custom_call.1} parent=1 // pred_fallthru
      _
    // Predicated region
    $region38: #{tpu_custom_call.1} parent=1 // pred_check
      _
    $region39: #{tpu_custom_call.1} parent=1 // pred_check_branch
      %201 = sbr.rel (0) target = $region41
    $region40: #{tpu_custom_call.1} parent=1 // pred_region
      %203 = dma.done [#allocation9], 16
    $region41: #{tpu_custom_call.1} parent=1 // pred_fallthru
      _
    // Predicated region
    $region42: #{tpu_custom_call.1} parent=1 // pred_check
      _
    $region43: #{tpu_custom_call.1} parent=1 // pred_check_branch
      %205 = sbr.rel (0) target = $region45
    $region44: #{tpu_custom_call.1} parent=1 // pred_region
      %207 = dma.done [#allocation8], 128
    $region45: #{tpu_custom_call.1} parent=1 // pred_fallthru
      _
    %208 = sfence
    %209 = vsyncpa [#allocation7], 1
    %210 = vsyncpa [#allocation11], 1
    %211 = vsyncpa [#allocation8], 1
    %212 = vsyncpa [#allocation9], 1

</llo_original>
